<compile_context>
chip_gen: v7x
topology: tpu7x:2x2x1
jax: 0.10.0
libtpu: 0.0.40
codegen_flags: <defaults>
</compile_context>

<pallas_src>
import math

import jax
import jax.numpy as jnp
from jax.experimental import pallas as pl
from jax.experimental.pallas import tpu as pltpu


def _game_kernel(x_ref, y_ref, o1_ref, o2_ref):
    prod = x_ref[...] * y_ref[...]
    o1_ref[...] = prod
    o2_ref[...] = -prod


def _pick_lane_dense_shape(n):
    """Choose a (rows, cols) flattening with a 128-multiple last dim."""
    for cols in (512, 256, 128):
        if n % cols == 0:
            return n // cols, cols
    return None


def _game_pallas_2d(x2, y2, block_rows):
    rows, cols = x2.shape
    grid = (pl.cdiv(rows, block_rows),)
    spec = pl.BlockSpec((block_rows, cols), lambda i: (i, 0))
    nbytes = x2.size * x2.dtype.itemsize
    return pl.pallas_call(
        _game_kernel,
        out_shape=(
            jax.ShapeDtypeStruct((rows, cols), x2.dtype),
            jax.ShapeDtypeStruct((rows, cols), x2.dtype),
        ),
        grid=grid,
        in_specs=[spec, spec],
        out_specs=(spec, spec),
        compiler_params=pltpu.CompilerParams(
            dimension_semantics=("parallel",),
        ),
        cost_estimate=pl.CostEstimate(
            flops=2 * x2.size,
            transcendentals=0,
            bytes_accessed=4 * nbytes,  # 2 inputs + 2 outputs
        ),
    )(x2, y2)


def _game_forward_impl(x, y):
    assert x.shape == y.shape and x.dtype == y.dtype
    orig_shape = x.shape
    n = math.prod(orig_shape)
    itemsize = jnp.dtype(x.dtype).itemsize

    shape2d = _pick_lane_dense_shape(n)
    if shape2d is None:
        # TODO(synk): pad to a 128-multiple for lane-dense stores on odd sizes;
        # fall back to a single full block with the native last dim.
        rows = math.prod(orig_shape[:-1])
        cols = orig_shape[-1]
        block_rows = rows
    else:
        rows, cols = shape2d
        # Cap tile at ~2 MiB so 4 arrays x 2 double-buffers stays well under the
        # scoped-VMEM default on every generation (incl. v7x's 64 MiB VMEM).
        cap = max(8, (2 * 1024 * 1024) // (cols * itemsize))
        if rows <= cap:
            block_rows = rows  # full dim: always a legal block extent
        else:
            block_rows = (cap // 8) * 8  # multiple of 8 (sublane constraint)

    x2 = x.reshape(rows, cols)
    y2 = y.reshape(rows, cols)
    o1, o2 = _game_pallas_2d(x2, y2, block_rows)
    return o1.reshape(orig_shape), o2.reshape(orig_shape)


@jax.custom_vjp
def game_forward(x, y):
    """(x * stop_grad(y), -stop_grad(x) * y), matching PyTorch Game.forward."""
    return _game_forward_impl(x, y)


def _game_fwd(x, y):
    return _game_forward_impl(x, y), (x, y)


def _game_bwd(res, g):
    x, y = res
    g1, g2 = g
    dx = g1 * y    # out1 = x * detach(y)  -> no grad to y through out1
    dy = -g2 * x   # out2 = -detach(x) * y -> no grad to x through out2
    return dx, dy


game_forward.defvjp(_game_fwd, _game_bwd)


if __name__ == "__main__":
    key = jax.random.PRNGKey(0)
    kx, ky = jax.random.split(key)
    B, C, H, W = 2, 4, 16, 16
    x = jax.random.normal(kx, (B, C, H, W), dtype=jnp.float32)
    y = jax.random.normal(ky, (B, C, H, W), dtype=jnp.float32)

    out1, out2 = game_forward(x, y)
    jax.block_until_ready(out1)
    jax.block_until_ready(out2)

    # Forward reference check (pure JAX).
    ref1 = x * y
    ref2 = -x * y
    assert jnp.allclose(out1, ref1, atol=1e-6, rtol=1e-6)
    assert jnp.allclose(out2, ref2, atol=1e-6, rtol=1e-6)

    print("KERNEL_OK")
</pallas_src>

<mosaic_0001>
module attributes {stable_mosaic.version = 11 : i64} {
  func.func @_game_kernel(%arg0: i32, %arg1: memref<4x512xf32, #tpu.memory_space<vmem>>, %arg2: memref<4x512xf32, #tpu.memory_space<vmem>>, %arg3: memref<4x512xf32, #tpu.memory_space<vmem>>, %arg4: memref<4x512xf32, #tpu.memory_space<vmem>>) attributes {dimension_semantics = [#tpu.dimension_semantics<parallel>], iteration_bounds = array<i64: 1>, scalar_prefetch = 0 : i64, scratch_operands = 0 : i64, tpu.core_type = #tpu.core_type<tc>, window_params = [{transform_indices = @transform_0, window_bounds = array<i64: 4, 512>}, {transform_indices = @transform_1, window_bounds = array<i64: 4, 512>}, {transform_indices = @transform_2, window_bounds = array<i64: 4, 512>}, {transform_indices = @transform_3, window_bounds = array<i64: 4, 512>}]} {
    %c0 = arith.constant 0 : index
    %c0_0 = arith.constant 0 : index
    %0 = vector.load %arg1[%c0, %c0_0] : memref<4x512xf32, #tpu.memory_space<vmem>>, vector<4x512xf32>
    %c0_1 = arith.constant 0 : index
    %c0_2 = arith.constant 0 : index
    %1 = vector.load %arg2[%c0_1, %c0_2] : memref<4x512xf32, #tpu.memory_space<vmem>>, vector<4x512xf32>
    %2 = arith.mulf %0, %1 : vector<4x512xf32>
    %c0_3 = arith.constant 0 : index
    %c0_4 = arith.constant 0 : index
    %3 = vector.load %arg3[%c0_3, %c0_4] : memref<4x512xf32, #tpu.memory_space<vmem>>, vector<4x512xf32>
    tpu.vector_store %arg3[%c0_3, %c0_4], %2 {strides = array<i32>} : memref<4x512xf32, #tpu.memory_space<vmem>>, vector<4x512xf32>,
    %cst = arith.constant 0.000000e+00 : f32
    %4 = vector.broadcast %cst : f32 to vector<4x512xf32>
    %5 = arith.subf %4, %2 : vector<4x512xf32>
    %c0_5 = arith.constant 0 : index
    %c0_6 = arith.constant 0 : index
    %6 = vector.load %arg4[%c0_5, %c0_6] : memref<4x512xf32, #tpu.memory_space<vmem>>, vector<4x512xf32>
    tpu.vector_store %arg4[%c0_5, %c0_6], %5 {strides = array<i32>} : memref<4x512xf32, #tpu.memory_space<vmem>>, vector<4x512xf32>,
    return
  }
  func.func @transform_0(%arg0: i32) -> (i32, i32) {
    %c0_i32 = arith.constant 0 : i32
    %c0_i32_0 = arith.constant 0 : i32
    return %arg0, %c0_i32 : i32, i32
  }
  func.func @transform_1(%arg0: i32) -> (i32, i32) {
    %c0_i32 = arith.constant 0 : i32
    %c0_i32_0 = arith.constant 0 : i32
    return %arg0, %c0_i32 : i32, i32
  }
  func.func @transform_2(%arg0: i32) -> (i32, i32) {
    %c0_i32 = arith.constant 0 : i32
    %c0_i32_0 = arith.constant 0 : i32
    return %arg0, %c0_i32 : i32, i32
  }
  func.func @transform_3(%arg0: i32) -> (i32, i32) {
    %c0_i32 = arith.constant 0 : i32
    %c0_i32_0 = arith.constant 0 : i32
    return %arg0, %c0_i32 : i32, i32
  }
}

</mosaic_0001>

<llo_original>
// kernel: tpu_custom_call.1
$region0: #{tpu_custom_call.1}
  #allocation0 [shape = 'u32[]', space=smem, size = 0x4, offset = 0x4, fixed_abs, tag = 'smem constant byte address 0x4 - core index']
  #allocation1 [shape = 'u32[144,128]{1,0:T(1,128)}', space=vmem, size = 0x12000, scoped, tag = 'internal scratch']
  %s0 = inlined_call_operand.hbm [shape: f32[4,512], index: 0, kind: input, shape index: {}]
  %s1 = inlined_call_operand.hbm [shape: f32[4,512], index: 1, kind: input, shape index: {}]
  %s2 = inlined_call_operand.hbm [shape: f32[4,512], index: 2, kind: output, shape index: {0}]
  %s3 = inlined_call_operand.hbm [shape: f32[4,512], index: 3, kind: output, shape index: {1}]
  %4 = xla_tuple %s2, %s3
  %s5 = sld [smem:[#allocation0]]
  $region34: #{tpu_custom_call.1} parent=0
    _
  %s7 = ssub.s32 1, %s5
  %s8 = scalar_select 0, %s7, %s5
  $region1: #{tpu_custom_call.1} parent=0
    #allocation2 [shape = 'u8[8192]{0}', space=vmem, size = 0x2000, scoped, tag = 'input window, operand 0, single buffered']
    #allocation3 [shape = 's32[1]{0}', space=sflag, size = 0x4, scoped, tag = 'scoped memory for tpu_custom_call.1']
    #allocation4 [shape = 's32[1]{0}', space=sflag, size = 0x4, scoped, tag = 'scoped memory for tpu_custom_call.1']
    #allocation5 [shape = 'u8[8192]{0}', space=vmem, size = 0x2000, scoped, tag = 'input window, operand 1, single buffered']
    #allocation6 [shape = 's32[1]{0}', space=sflag, size = 0x4, scoped, tag = 'scoped memory for tpu_custom_call.1']
    #allocation7 [shape = 'u8[8192]{0}', space=vmem, size = 0x2000, scoped, tag = 'output window, operand 0, single buffered']
    #allocation8 [shape = 'u8[8192]{0}', space=vmem, size = 0x2000, scoped, tag = 'output window, operand 1, single buffered']
    #allocation9 [shape = 's32[1]{0}', space=sflag, size = 0x4, scoped, tag = 'scoped memory for tpu_custom_call.1']
    %9 = vsyncpa [#allocation3], 0
    %10 = vsyncpa [#allocation6], 0
    %11 = vsyncpa [#allocation4], 0
    %12 = vsyncpa [#allocation9], 0
    // Predicated region
    $region2: #{tpu_custom_call.1} parent=1 // pred_check
      _
    $region3: #{tpu_custom_call.1} parent=1 // pred_check_branch
      %14 = sbr.rel (0) target = $region5
    $region4: #{tpu_custom_call.1} parent=1 // pred_region
      %s16 = ssub.s32 256, 256
      %17 = vsyncadd [#allocation3], %s16
      %s19 = sshll.u32 [#allocation2], 4
      %s20 = int_to_ptr.vmem [resolvable:$true] %s19
      %22 = dma.hbm_to_vmem [thread:$0]  %s0, 256, %s20, [#allocation3]
    $region5: #{tpu_custom_call.1} parent=1 // pred_fallthru
      _
    // Predicated region
    $region6: #{tpu_custom_call.1} parent=1 // pred_check
      _
    $region7: #{tpu_custom_call.1} parent=1 // pred_check_branch
      %24 = sbr.rel (0) target = $region9
    $region8: #{tpu_custom_call.1} parent=1 // pred_region
      %s26 = ssub.s32 256, 256
      %27 = vsyncadd [#allocation6], %s26
      %s29 = sshll.u32 [#allocation5], 4
      %s30 = int_to_ptr.vmem [resolvable:$true] %s29
      %32 = dma.hbm_to_vmem [thread:$0]  %s1, 256, %s30, [#allocation6]
    $region9: #{tpu_custom_call.1} parent=1 // pred_fallthru
      _
    // Predicated region
    $region10: #{tpu_custom_call.1} parent=1 // pred_check
      _
    $region11: #{tpu_custom_call.1} parent=1 // pred_check_branch
      %34 = sbr.rel (0) target = $region13
    $region12: #{tpu_custom_call.1} parent=1 // pred_region
      %35 = dma.done [#allocation3], 256
    $region13: #{tpu_custom_call.1} parent=1 // pred_fallthru
      _
    // Predicated region
    $region14: #{tpu_custom_call.1} parent=1 // pred_check
      _
    $region15: #{tpu_custom_call.1} parent=1 // pred_check_branch
      %37 = sbr.rel (0) target = $region17
    $region16: #{tpu_custom_call.1} parent=1 // pred_region
      %38 = dma.done [#allocation6], 256
    $region17: #{tpu_custom_call.1} parent=1 // pred_fallthru
      _
    %v39 = vld [vmem:[#allocation2] sm:$0xff]
    %v40 = vld [vmem:[#allocation2 + $0x8] sm:$0xff]
    %v41 = vld [vmem:[#allocation5] sm:$0xff]
    %v42 = vld [vmem:[#allocation5 + $0x8] sm:$0xff]
    %v43 = vmul.f32 %v39, %v41
    %v44 = vmul.f32 %v40, %v42
    %45 = vst [vmem:[#allocation7] sm:$0xff] %v43
    %46 = vst [vmem:[#allocation7 + $0x8] sm:$0xff] %v44
    %v47 = vsub.f32 0.0, %v43
    %v48 = vsub.f32 0.0, %v44
    %49 = vst [vmem:[#allocation8] sm:$0xff] %v47
    %50 = vst [vmem:[#allocation8 + $0x8] sm:$0xff] %v48
    // Predicated region
    $region18: #{tpu_custom_call.1} parent=1 // pred_check
      _
    $region19: #{tpu_custom_call.1} parent=1 // pred_check_branch
      %52 = sbr.rel (0) target = $region21
    $region20: #{tpu_custom_call.1} parent=1 // pred_region
      %s54 = ssub.s32 256, 256
      %55 = vsyncadd [#allocation4], %s54
      %s57 = sshll.u32 [#allocation7], 4
      %s58 = int_to_ptr.vmem [resolvable:$true] %s57
      %60 = dma.vmem_to_hbm [thread:$0]  %s58, 256, %s2, [#allocation4]
    $region21: #{tpu_custom_call.1} parent=1 // pred_fallthru
      _
    // Predicated region
    $region22: #{tpu_custom_call.1} parent=1 // pred_check
      _
    $region23: #{tpu_custom_call.1} parent=1 // pred_check_branch
      %62 = sbr.rel (0) target = $region25
    $region24: #{tpu_custom_call.1} parent=1 // pred_region
      %s64 = ssub.s32 256, 256
      %65 = vsyncadd [#allocation9], %s64
      %s67 = sshll.u32 [#allocation8], 4
      %s68 = int_to_ptr.vmem [resolvable:$true] %s67
      %70 = dma.vmem_to_hbm [thread:$0]  %s68, 256, %s3, [#allocation9]
    $region25: #{tpu_custom_call.1} parent=1 // pred_fallthru
      _
    // Predicated region
    $region26: #{tpu_custom_call.1} parent=1 // pred_check
      _
    $region27: #{tpu_custom_call.1} parent=1 // pred_check_branch
      %72 = sbr.rel (0) target = $region29
    $region28: #{tpu_custom_call.1} parent=1 // pred_region
      %73 = dma.done [#allocation4], 256
    $region29: #{tpu_custom_call.1} parent=1 // pred_fallthru
      _
    // Predicated region
    $region30: #{tpu_custom_call.1} parent=1 // pred_check
      _
    $region31: #{tpu_custom_call.1} parent=1 // pred_check_branch
      %75 = sbr.rel (0) target = $region33
    $region32: #{tpu_custom_call.1} parent=1 // pred_region
      %76 = dma.done [#allocation9], 256
    $region33: #{tpu_custom_call.1} parent=1 // pred_fallthru
      _
    %77 = vsyncpa [#allocation3], 1
    %78 = vsyncpa [#allocation6], 1
    %79 = vsyncpa [#allocation4], 1
    %80 = vsyncpa [#allocation9], 1

</llo_original>
